<compile_context>
chip_gen: v7x
topology: tpu7x:2x2x1
jax: 0.10.0
libtpu: 0.0.40
codegen_flags: <defaults>
</compile_context>

<pallas_src>
import functools

import jax
import jax.numpy as jnp
from jax.experimental import pallas as pl
from jax.experimental.pallas import tpu as pltpu


def _round_up(a: int, m: int) -> int:
    return (a + m - 1) // m * m


def _cdiv(a: int, b: int) -> int:
    return (a + b - 1) // b


def _param_layout(input_size: int, hid_pad: int):
    """Row offsets of each tensor inside the packed bf16 param buffer.

    All offsets are multiples of 16 (bf16 packs 16 rows per sublane group).
    """
    in_slot = _round_up(input_size, 16)
    o_w1 = 0
    o_b1 = o_w1 + in_slot
    o_w2 = o_b1 + 16
    o_b2 = o_w2 + hid_pad
    o_w3 = o_b2 + 16
    o_b3 = o_w3 + hid_pad
    total_rows = o_b3 + 16
    return (o_w1, o_b1, o_w2, o_b2, o_w3, o_b3), total_rows


def pack_params(params, input_size: int, hidden_size: int, output_size: int):
    """Pack (and zero-pad) all six params into ONE bf16 (rows, C) buffer.

    Called once at init; the packed buffer is reused by every forward call
    (no per-call pad/concat on the hot path).
    """
    hid_pad = _round_up(hidden_size, 128)
    out_pad = _round_up(output_size, 128)
    C = max(hid_pad, out_pad)
    offs, total_rows = _param_layout(input_size, hid_pad)
    in_slot = offs[1] - offs[0]

    def pad2(a, rows, cols):
        a = a.astype(jnp.bfloat16)
        return jnp.pad(a, ((0, rows - a.shape[0]), (0, cols - a.shape[1])))

    packed = jnp.concatenate([
        pad2(params["w1"], in_slot, C),   # (input_size, hidden)  -> (in_slot, C)
        pad2(params["b1"], 16, C),        # (1, hidden)           -> (16, C)
        pad2(params["w2"], hid_pad, C),   # (hidden, hidden)      -> (hid_pad, C)
        pad2(params["b2"], 16, C),
        pad2(params["w3"], hid_pad, C),   # (hidden, output)      -> (hid_pad, C)
        pad2(params["b3"], 16, C),
    ], axis=0)
    assert packed.shape == (total_rows, C), packed.shape
    return packed


def make_dqn_kernel(input_size, hid_pad, out_pad, offs):
    o_w1, o_b1, o_w2, o_b2, o_w3, o_b3 = offs

    def dqn_kernel(x_ref, p_ref, o_ref):
        # x tile: (TB, input_size) f32 -> bf16 for the MXU.
        x = x_ref[...].astype(jnp.bfloat16)

        # Static slices into the resident packed bf16 param buffer.
        w1 = p_ref[o_w1:o_w1 + input_size, :hid_pad]
        b1 = p_ref[o_b1:o_b1 + 1, :hid_pad]
        w2 = p_ref[o_w2:o_w2 + hid_pad, :hid_pad]
        b2 = p_ref[o_b2:o_b2 + 1, :hid_pad]
        w3 = p_ref[o_w3:o_w3 + hid_pad, :out_pad]
        b3 = p_ref[o_b3:o_b3 + 1, :out_pad]

        # Layer 1: Linear + ReLU (bf16 MXU matmul, f32 accumulation).
        h1 = jnp.dot(x, w1, preferred_element_type=jnp.float32)
        h1 = jnp.maximum(h1 + b1.astype(jnp.float32), 0.0)

        # Layer 2: Linear + ReLU.
        h2 = jnp.dot(h1.astype(jnp.bfloat16), w2,
                     preferred_element_type=jnp.float32)
        h2 = jnp.maximum(h2 + b2.astype(jnp.float32), 0.0)

        # Layer 3: Linear (no activation); lane-dense f32 store.
        out = jnp.dot(h2.astype(jnp.bfloat16), w3,
                      preferred_element_type=jnp.float32)
        o_ref[...] = out + b3.astype(jnp.float32)

    return dqn_kernel


def _pick_batch_tile(B: int) -> int:
    """Batch tile (multiple of 8), capped at 512, keeping >=2 grid steps for
    mid-size batches so v7x's two TensorCores both get work."""
    b8 = _round_up(B, 8)
    if b8 <= 8:
        return b8                       # tiny batch: one step is all we have
    if b8 <= 1024:
        return _round_up(_cdiv(b8, 2), 8)   # split into ~2 steps (megacore)
    return 512                          # large batch: amortize per-step cost


@functools.partial(jax.jit, static_argnames=("input_size", "hidden_size",
                                             "output_size"))
def dqn_forward(x, packed, *, input_size, hidden_size, output_size):
    """x: (B, input_size) f32; packed: bf16 buffer from pack_params()."""
    B = x.shape[0]
    hid_pad = _round_up(hidden_size, 128)
    out_pad = _round_up(output_size, 128)
    offs, total_rows = _param_layout(input_size, hid_pad)
    assert packed.shape == (total_rows, max(hid_pad, out_pad))

    TB = _pick_batch_tile(B)
    B_PAD = _round_up(B, TB)

    x = x.astype(jnp.float32)
    if B_PAD != B:
        x = jnp.pad(x, ((0, B_PAD - B), (0, 0)))   # batch pad only; no feature pad

    kernel = make_dqn_kernel(input_size, hid_pad, out_pad, offs)
    grid = (B_PAD // TB,)
    cost = pl.CostEstimate(
        flops=2 * B_PAD * (input_size * hid_pad + hid_pad * hid_pad
                           + hid_pad * out_pad),
        transcendentals=0,
        bytes_accessed=(x.size * 4              # f32 activations in
                        + packed.size * 2       # bf16 params
                        + B_PAD * out_pad * 4), # f32 output
    )

    out = pl.pallas_call(
        kernel,
        out_shape=jax.ShapeDtypeStruct((B_PAD, out_pad), jnp.float32),
        grid=grid,
        in_specs=[
            # Activations: tiled over the batch grid axis; last dim == full
            # array dim, so no 128-lane padding is needed in the wrapper.
            pl.BlockSpec((TB, input_size), lambda i: (i, 0)),
            # Packed params: one block, constant index_map -> resident in VMEM
            # across all grid steps.  (~80 KB in bf16 at these sizes, so the
            # default double-buffer costs nothing worth chasing.
            # TODO(synk): use pipeline_mode=pl.Buffered(1) here once single-
            # buffer mode is confirmed on the target jaxlib, and add a K/hidden
            # reduction axis if hidden_size ever grows to ~1-2K.)
            pl.BlockSpec(packed.shape, lambda i: (0, 0)),
        ],
        out_specs=pl.BlockSpec((TB, out_pad), lambda i: (i, 0)),
        compiler_params=pltpu.CompilerParams(
            dimension_semantics=("parallel",),
        ),
        cost_estimate=cost,
    )(x, packed)

    return out[:B, :output_size]


def init_params(key, input_size, hidden_size, output_size):
    """PyTorch-style uniform init: U(-1/sqrt(fan_in), +1/sqrt(fan_in))."""
    ks = jax.random.split(key, 6)

    def linear(kw, kb, fan_in, fan_out):
        bound = 1.0 / jnp.sqrt(jnp.float32(fan_in))
        w = jax.random.uniform(kw, (fan_in, fan_out), jnp.float32, -bound, bound)
        b = jax.random.uniform(kb, (1, fan_out), jnp.float32, -bound, bound)
        return w, b

    w1, b1 = linear(ks[0], ks[1], input_size, hidden_size)
    w2, b2 = linear(ks[2], ks[3], hidden_size, hidden_size)
    w3, b3 = linear(ks[4], ks[5], hidden_size, output_size)
    return {"w1": w1, "b1": b1, "w2": w2, "b2": b2, "w3": w3, "b3": b3}


def dqn_reference_bf16(x, p):
    """Pure-JAX reference using the same bf16-weight / f32-accumulate numerics
    as the kernel (for a tight correctness check)."""
    def lin(a, w, b):
        y = jnp.dot(a.astype(jnp.bfloat16), w.astype(jnp.bfloat16),
                    preferred_element_type=jnp.float32)
        return y + b.astype(jnp.bfloat16).astype(jnp.float32)
    h1 = jnp.maximum(lin(x, p["w1"], p["b1"]), 0.0)
    h2 = jnp.maximum(lin(h1, p["w2"], p["b2"]), 0.0)
    return lin(h2, p["w3"], p["b3"])


def dqn_reference_f32(x, p):
    h1 = jnp.maximum(x @ p["w1"] + p["b1"], 0.0)
    h2 = jnp.maximum(h1 @ p["w2"] + p["b2"], 0.0)
    return h2 @ p["w3"] + p["b3"]


if __name__ == "__main__":
    # CatchBall-like sizes: state vector of 16 features, hidden 32, 3 actions.
    B, INPUT_SIZE, HIDDEN_SIZE, OUTPUT_SIZE = 2, 16, 32, 3

    key = jax.random.PRNGKey(0)
    k_x, k_p = jax.random.split(key)

    x = jax.random.normal(k_x, (B, INPUT_SIZE), dtype=jnp.float32)
    params = init_params(k_p, INPUT_SIZE, HIDDEN_SIZE, OUTPUT_SIZE)

    # Pack once at init (hoisted out of the per-call forward path).
    packed = pack_params(params, INPUT_SIZE, HIDDEN_SIZE, OUTPUT_SIZE)
    packed = jax.block_until_ready(packed)

    out = dqn_forward(x, packed, input_size=INPUT_SIZE,
                      hidden_size=HIDDEN_SIZE, output_size=OUTPUT_SIZE)
    out = jax.block_until_ready(out)
    assert out.shape == (B, OUTPUT_SIZE), out.shape

    # Tight check vs a reference with identical bf16-weight numerics.
    ref_bf16 = dqn_reference_bf16(x, params)
    assert jnp.allclose(out, ref_bf16, atol=1e-3, rtol=1e-3), \
        "mismatch vs bf16-weight reference"

    # Loose sanity check vs the pure-f32 PyTorch-equivalent math.
    ref_f32 = dqn_reference_f32(x, params)
    assert jnp.allclose(out, ref_f32, atol=3e-2, rtol=3e-2), \
        "mismatch vs f32 reference"

    print("KERNEL_OK")
</pallas_src>

<mosaic_0001>
module attributes {stable_mosaic.version = 11 : i64} {
  func.func @dqn_kernel(%arg0: i32, %arg1: memref<8x16xf32, #tpu.memory_space<vmem>>, %arg2: memref<320x128xbf16, #tpu.memory_space<vmem>>, %arg3: memref<8x128xf32, #tpu.memory_space<vmem>>) attributes {dimension_semantics = [#tpu.dimension_semantics<parallel>], iteration_bounds = array<i64: 1>, scalar_prefetch = 0 : i64, scratch_operands = 0 : i64, tpu.core_type = #tpu.core_type<tc>, window_params = [{transform_indices = @transform_0, window_bounds = array<i64: 8, 16>}, {pipeline_mode = #tpu.pipeline_mode<synchronous>, transform_indices = @transform_1, window_bounds = array<i64: 320, 128>}, {transform_indices = @transform_2, window_bounds = array<i64: 8, 128>}]} {
    %c0 = arith.constant 0 : index
    %c0_0 = arith.constant 0 : index
    %0 = vector.load %arg1[%c0, %c0_0] : memref<8x16xf32, #tpu.memory_space<vmem>>, vector<8x16xf32>
    %1 = arith.truncf %0 : vector<8x16xf32> to vector<8x16xbf16>
    %c0_1 = arith.constant 0 : index
    %c0_2 = arith.constant 0 : index
    %2 = vector.load %arg2[%c0_1, %c0_2] : memref<320x128xbf16, #tpu.memory_space<vmem>>, vector<16x128xbf16>
    %c16 = arith.constant 16 : index
    %c0_3 = arith.constant 0 : index
    %3 = vector.load %arg2[%c16, %c0_3] : memref<320x128xbf16, #tpu.memory_space<vmem>>, vector<1x128xbf16>
    %c32 = arith.constant 32 : index
    %c0_4 = arith.constant 0 : index
    %4 = vector.load %arg2[%c32, %c0_4] : memref<320x128xbf16, #tpu.memory_space<vmem>>, vector<128x128xbf16>
    %c160 = arith.constant 160 : index
    %c0_5 = arith.constant 0 : index
    %5 = vector.load %arg2[%c160, %c0_5] : memref<320x128xbf16, #tpu.memory_space<vmem>>, vector<1x128xbf16>
    %c176 = arith.constant 176 : index
    %c0_6 = arith.constant 0 : index
    %6 = vector.load %arg2[%c176, %c0_6] : memref<320x128xbf16, #tpu.memory_space<vmem>>, vector<128x128xbf16>
    %c304 = arith.constant 304 : index
    %c0_7 = arith.constant 0 : index
    %7 = vector.load %arg2[%c304, %c0_7] : memref<320x128xbf16, #tpu.memory_space<vmem>>, vector<1x128xbf16>
    %cst = arith.constant dense<0.000000e+00> : vector<8x128xf32>
    %8 = tpu.matmul %1, %2, %cst {dimension_numbers = #tpu.dot_dimension_numbers<[1], [0], [0], [1], [0, 0, 1, 1], [], []>} : vector<8x16xbf16>, vector<16x128xbf16>, vector<8x128xf32> -> vector<8x128xf32>
    %9 = arith.extf %3 : vector<1x128xbf16> to vector<1x128xf32>
    %10 = vector.broadcast %9 : vector<1x128xf32> to vector<8x128xf32>
    %11 = arith.addf %8, %10 : vector<8x128xf32>
    %cst_8 = arith.constant 0.000000e+00 : f32
    %12 = vector.broadcast %cst_8 : f32 to vector<8x128xf32>
    %13 = arith.maximumf %11, %12 : vector<8x128xf32>
    %14 = arith.truncf %13 : vector<8x128xf32> to vector<8x128xbf16>
    %cst_9 = arith.constant dense<0.000000e+00> : vector<8x128xf32>
    %15 = tpu.matmul %14, %4, %cst_9 {dimension_numbers = #tpu.dot_dimension_numbers<[1], [0], [0], [1], [0, 0, 1, 1], [], []>} : vector<8x128xbf16>, vector<128x128xbf16>, vector<8x128xf32> -> vector<8x128xf32>
    %16 = arith.extf %5 : vector<1x128xbf16> to vector<1x128xf32>
    %17 = vector.broadcast %16 : vector<1x128xf32> to vector<8x128xf32>
    %18 = arith.addf %15, %17 : vector<8x128xf32>
    %cst_10 = arith.constant 0.000000e+00 : f32
    %19 = vector.broadcast %cst_10 : f32 to vector<8x128xf32>
    %20 = arith.maximumf %18, %19 : vector<8x128xf32>
    %21 = arith.truncf %20 : vector<8x128xf32> to vector<8x128xbf16>
    %cst_11 = arith.constant dense<0.000000e+00> : vector<8x128xf32>
    %22 = tpu.matmul %21, %6, %cst_11 {dimension_numbers = #tpu.dot_dimension_numbers<[1], [0], [0], [1], [0, 0, 1, 1], [], []>} : vector<8x128xbf16>, vector<128x128xbf16>, vector<8x128xf32> -> vector<8x128xf32>
    %23 = arith.extf %7 : vector<1x128xbf16> to vector<1x128xf32>
    %24 = vector.broadcast %23 : vector<1x128xf32> to vector<8x128xf32>
    %25 = arith.addf %22, %24 : vector<8x128xf32>
    %c0_12 = arith.constant 0 : index
    %c0_13 = arith.constant 0 : index
    %26 = vector.load %arg3[%c0_12, %c0_13] : memref<8x128xf32, #tpu.memory_space<vmem>>, vector<8x128xf32>
    tpu.vector_store %arg3[%c0_12, %c0_13], %25 {strides = array<i32>} : memref<8x128xf32, #tpu.memory_space<vmem>>, vector<8x128xf32>,
    return
  }
  func.func @transform_0(%arg0: i32) -> (i32, i32) {
    %c0_i32 = arith.constant 0 : i32
    %c0_i32_0 = arith.constant 0 : i32
    return %arg0, %c0_i32 : i32, i32
  }
  func.func @transform_1(%arg0: i32) -> (i32, i32) {
    %c0_i32 = arith.constant 0 : i32
    %c0_i32_0 = arith.constant 0 : i32
    %c0_i32_1 = arith.constant 0 : i32
    return %c0_i32, %c0_i32_0 : i32, i32
  }
  func.func @transform_2(%arg0: i32) -> (i32, i32) {
    %c0_i32 = arith.constant 0 : i32
    %c0_i32_0 = arith.constant 0 : i32
    return %arg0, %c0_i32 : i32, i32
  }
}

</mosaic_0001>

<llo_original>
// kernel: dqn_forward.1
$region0: #{dqn_forward.1}
  #allocation0 [shape = 'u32[]', space=smem, size = 0x4, offset = 0x4, fixed_abs, tag = 'smem constant byte address 0x4 - core index']
  #allocation1 [shape = 'u32[144,128]{1,0:T(1,128)}', space=vmem, size = 0x12000, scoped, tag = 'internal scratch']
  %s0 = inlined_call_operand.vmem [shape: f32[8,16], index: 0, kind: input, shape index: {}]
  %s1 = inlined_call_operand.hbm [shape: bf16[320,128], index: 1, kind: input, shape index: {}]
  %s2 = inlined_call_operand.vmem [shape: f32[8,128], index: 2, kind: output, shape index: {}]
  %s3 = sld [smem:[#allocation0]]
  $region22: #{dqn_forward.1} parent=0
    _
  %s5 = ssub.s32 1, %s3
  %s6 = scalar_select 0, %s5, %s3
  $region1: #{dqn_forward.1} parent=0
    #allocation2 [shape = 'u8[81920]{0}', space=vmem, size = 0x14000, scoped, tag = 'input window, operand 1, single buffered']
    #allocation3 [shape = 's32[1]{0}', space=sflag, size = 0x4, scoped, tag = 'scoped memory for dqn_forward.1']
    %7 = vsyncpa [#allocation3], 0
    // Predicated region
    $region2: #{dqn_forward.1} parent=1 // pred_check
      _
    $region3: #{dqn_forward.1} parent=1 // pred_check_branch
      %9 = sbr.rel (0) target = $region5
    $region4: #{dqn_forward.1} parent=1 // pred_region
      _
    $region5: #{dqn_forward.1} parent=1 // pred_fallthru
      _
    // Predicated region
    $region6: #{dqn_forward.1} parent=1 // pred_check
      _
    $region7: #{dqn_forward.1} parent=1 // pred_check_branch
      %11 = sbr.rel (0) target = $region9
    $region8: #{dqn_forward.1} parent=1 // pred_region
      %s13 = ssub.s32 2560, 2560
      %14 = vsyncadd [#allocation3], %s13
      %s15 = sshll.u32 [#allocation2], 4
      %s16 = int_to_ptr.vmem [resolvable:$true] %s15
      %21 = dma.hbm_to_vmem [thread:$0]  %s1, 2560, %s16, [#allocation3], 64, 64, 4
    $region9: #{dqn_forward.1} parent=1 // pred_fallthru
      _
    // Predicated region
    $region10: #{dqn_forward.1} parent=1 // pred_check
      _
    $region11: #{dqn_forward.1} parent=1 // pred_check_branch
      %23 = sbr.rel (0) target = $region13
    $region12: #{dqn_forward.1} parent=1 // pred_region
      %24 = dma.done [#allocation3], 2560
    $region13: #{dqn_forward.1} parent=1 // pred_fallthru
      _
    %v26 = vld [vmem:[%s0] sm:$0xff]
    %v27 = vpack.c.bf16 %v26, %v26
    %v28 = vld [vmem:[#allocation2] sm:$0xf]
    %v29 = vld [vmem:[#allocation2 + $0x4] sm:$0xf]
    %v30 = vld [vmem:[#allocation2 + $0x8] sm:$0x1]
    %v31 = vld [vmem:[#allocation2 + $0x10] sm:$0xf]
    %v32 = vld [vmem:[#allocation2 + $0x14] sm:$0xf]
    %v33 = vld [vmem:[#allocation2 + $0x18] sm:$0xf]
    %v34 = vld [vmem:[#allocation2 + $0x1c] sm:$0xf]
    %v35 = vld [vmem:[#allocation2 + $0x20] sm:$0xf]
    %v36 = vld [vmem:[#allocation2 + $0x24] sm:$0xf]
    %v37 = vld [vmem:[#allocation2 + $0x28] sm:$0xf]
    %v38 = vld [vmem:[#allocation2 + $0x2c] sm:$0xf]
    %v39 = vld [vmem:[#allocation2 + $0x30] sm:$0xf]
    %v40 = vld [vmem:[#allocation2 + $0x34] sm:$0xf]
    %v41 = vld [vmem:[#allocation2 + $0x38] sm:$0xf]
    %v42 = vld [vmem:[#allocation2 + $0x3c] sm:$0xf]
    %v43 = vld [vmem:[#allocation2 + $0x40] sm:$0xf]
    %v44 = vld [vmem:[#allocation2 + $0x44] sm:$0xf]
    %v45 = vld [vmem:[#allocation2 + $0x48] sm:$0xf]
    %v46 = vld [vmem:[#allocation2 + $0x4c] sm:$0xf]
    %v47 = vld [vmem:[#allocation2 + $0x50] sm:$0x1]
    %v48 = vld [vmem:[#allocation2 + $0x58] sm:$0xf]
    %v49 = vld [vmem:[#allocation2 + $0x5c] sm:$0xf]
    %v50 = vld [vmem:[#allocation2 + $0x60] sm:$0xf]
    %v51 = vld [vmem:[#allocation2 + $0x64] sm:$0xf]
    %v52 = vld [vmem:[#allocation2 + $0x68] sm:$0xf]
    %v53 = vld [vmem:[#allocation2 + $0x6c] sm:$0xf]
    %v54 = vld [vmem:[#allocation2 + $0x70] sm:$0xf]
    %v55 = vld [vmem:[#allocation2 + $0x74] sm:$0xf]
    %v56 = vld [vmem:[#allocation2 + $0x78] sm:$0xf]
    %v57 = vld [vmem:[#allocation2 + $0x7c] sm:$0xf]
    %v58 = vld [vmem:[#allocation2 + $0x80] sm:$0xf]
    %v59 = vld [vmem:[#allocation2 + $0x84] sm:$0xf]
    %v60 = vld [vmem:[#allocation2 + $0x88] sm:$0xf]
    %v61 = vld [vmem:[#allocation2 + $0x8c] sm:$0xf]
    %v62 = vld [vmem:[#allocation2 + $0x90] sm:$0xf]
    %v63 = vld [vmem:[#allocation2 + $0x94] sm:$0xf]
    %v64 = vld [vmem:[#allocation2 + $0x98] sm:$0x1]
    %v65 = vunpack.c.l.bf16 %v30
    %v66 = vlaneseq
    %v67 = vshrl.u32 %v66, 7
    %v68 = vsub.s32 0, %v67
    %v69 = vrot.slane %v65, %v68
    %v72 = vunpack.c.l.b16 %v28
    %v73 = vunpack.c.l.b16 %v29
    %v74 = vpack.c.b16 %v73, %v72
    %vm76 = vcmask 130048
    %v78 = vsel %vm76, %v27, 0
    %80 = vmatprep.subr.bf16.mxu0 0
    %81 = vmatpush1.bf16.msra.mxu0 %v74
    %82 = vmatprep.subr.bf16.mxu0 0
    %83 = vmatpush1.bf16.msra.mxu0 0
    %84 = vmatprep.subr.bf16.mxu0 0
    %85 = vmatpush1.bf16.msra.mxu0 0
    %86 = vmatprep.subr.bf16.mxu0 0
    %87 = vmatpush1.bf16.msra.mxu0 0
    %88 = vmatprep.subr.bf16.mxu0 0
    %89 = vmatpush1.bf16.msra.mxu0 0
    %90 = vmatprep.subr.bf16.mxu0 0
    %91 = vmatpush1.bf16.msra.mxu0 0
    %92 = vmatprep.subr.bf16.mxu0 0
    %93 = vmatpush1.bf16.msra.mxu0 0
    %94 = vmatprep.subr.bf16.mxu0 0
    %95 = vmatpush1.bf16.msra.mxu0 0
    %96 = vmatprep.subr.bf16.mxu0 0
    %97 = vmatpush1.bf16.msra.mxu0 0
    %98 = vmatprep.subr.bf16.mxu0 0
    %99 = vmatpush1.bf16.msra.mxu0 0
    %100 = vmatprep.subr.bf16.mxu0 0
    %101 = vmatpush1.bf16.msra.mxu0 0
    %102 = vmatprep.subr.bf16.mxu0 0
    %103 = vmatpush1.bf16.msra.mxu0 0
    %104 = vmatprep.subr.bf16.mxu0 0
    %105 = vmatpush1.bf16.msra.mxu0 0
    %106 = vmatprep.subr.bf16.mxu0 0
    %107 = vmatpush1.bf16.msra.mxu0 0
    %108 = vmatprep.subr.bf16.mxu0 0
    %109 = vmatpush1.bf16.msra.mxu0 0
    %110 = vmatprep.subr.bf16.mxu0 0
    %111 = vmatpush1.bf16.msra.mxu0 0
    %112 = vmatprep.mubr.bf16.mxu0 0
    %113 = vmatmul.mubr.bf16.gmra.mrb[0].mxu0 %v78
    %v114 = vpop.f32.mrb[0].mxu0
    %v115 = vadd.f32 %v69, %v114
    %v116 = vpop.f32.mrb[0].mxu0
    %v117 = vpop.f32.mrb[0].mxu0
    %v118 = vpop.f32.mrb[0].mxu0
    %119 = vdwg.mxu0
    %v120 = vmax.f32 %v115, 0.0
    %v121 = vpack.c.bf16 %v120, %v120
    %v122 = vunpack.c.l.bf16 %v47
    %v123 = vlaneseq
    %v124 = vshrl.u32 %v123, 7
    %v125 = vsub.s32 0, %v124
    %v126 = vrot.slane %v122, %v125
    %v143 = vunpack.c.l.b16 %v31
    %v144 = vunpack.c.l.b16 %v32
    %v145 = vunpack.c.l.b16 %v33
    %v146 = vunpack.c.l.b16 %v34
    %v147 = vunpack.c.l.b16 %v35
    %v148 = vunpack.c.l.b16 %v36
    %v149 = vunpack.c.l.b16 %v37
    %v150 = vunpack.c.l.b16 %v38
    %v151 = vunpack.c.l.b16 %v39
    %v152 = vunpack.c.l.b16 %v40
    %v153 = vunpack.c.l.b16 %v41
    %v154 = vunpack.c.l.b16 %v42
    %v155 = vunpack.c.l.b16 %v43
    %v156 = vunpack.c.l.b16 %v44
    %v157 = vunpack.c.l.b16 %v45
    %v158 = vunpack.c.l.b16 %v46
    %v159 = vpack.c.b16 %v144, %v143
    %v160 = vpack.c.b16 %v146, %v145
    %v161 = vpack.c.b16 %v148, %v147
    %v162 = vpack.c.b16 %v150, %v149
    %v163 = vpack.c.b16 %v152, %v151
    %v164 = vpack.c.b16 %v154, %v153
    %v165 = vpack.c.b16 %v156, %v155
    %v166 = vpack.c.b16 %v158, %v157
    %175 = vmatprep.subr.bf16.mxu0 0
    %176 = vmatpush1.bf16.msra.mxu0 %v159
    %177 = vmatprep.subr.bf16.mxu0 0
    %178 = vmatpush1.bf16.msra.mxu0 %v160
    %179 = vmatprep.subr.bf16.mxu0 0
    %180 = vmatpush1.bf16.msra.mxu0 %v161
    %181 = vmatprep.subr.bf16.mxu0 0
    %182 = vmatpush1.bf16.msra.mxu0 %v162
    %183 = vmatprep.subr.bf16.mxu0 0
    %184 = vmatpush1.bf16.msra.mxu0 %v163
    %185 = vmatprep.subr.bf16.mxu0 0
    %186 = vmatpush1.bf16.msra.mxu0 %v164
    %187 = vmatprep.subr.bf16.mxu0 0
    %188 = vmatpush1.bf16.msra.mxu0 %v165
    %189 = vmatprep.subr.bf16.mxu0 0
    %190 = vmatpush1.bf16.msra.mxu0 %v166
    %191 = vmatprep.subr.bf16.mxu0 0
    %192 = vmatpush1.bf16.msra.mxu0 0
    %193 = vmatprep.subr.bf16.mxu0 0
    %194 = vmatpush1.bf16.msra.mxu0 0
    %195 = vmatprep.subr.bf16.mxu0 0
    %196 = vmatpush1.bf16.msra.mxu0 0
    %197 = vmatprep.subr.bf16.mxu0 0
    %198 = vmatpush1.bf16.msra.mxu0 0
    %199 = vmatprep.subr.bf16.mxu0 0
    %200 = vmatpush1.bf16.msra.mxu0 0
    %201 = vmatprep.subr.bf16.mxu0 0
    %202 = vmatpush1.bf16.msra.mxu0 0
    %203 = vmatprep.subr.bf16.mxu0 0
    %204 = vmatpush1.bf16.msra.mxu0 0
    %205 = vmatprep.subr.bf16.mxu0 0
    %206 = vmatpush1.bf16.msra.mxu0 0
    %207 = vmatprep.mubr.bf16.mxu0 0
    %208 = vmatmul.mubr.bf16.gmra.mrb[0].mxu0 %v121
    %v209 = vpop.f32.mrb[0].mxu0
    %v210 = vadd.f32 %v126, %v209
    %v211 = vpop.f32.mrb[0].mxu0
    %v212 = vpop.f32.mrb[0].mxu0
    %v213 = vpop.f32.mrb[0].mxu0
    %214 = vdwg.mxu0
    %v215 = vmax.f32 %v210, 0.0
    %v216 = vpack.c.bf16 %v215, %v215
    %v217 = vunpack.c.l.bf16 %v64
    %v218 = vlaneseq
    %v219 = vshrl.u32 %v218, 7
    %v220 = vsub.s32 0, %v219
    %v221 = vrot.slane %v217, %v220
    %v238 = vunpack.c.l.b16 %v48
    %v239 = vunpack.c.l.b16 %v49
    %v240 = vunpack.c.l.b16 %v50
    %v241 = vunpack.c.l.b16 %v51
    %v242 = vunpack.c.l.b16 %v52
    %v243 = vunpack.c.l.b16 %v53
    %v244 = vunpack.c.l.b16 %v54
    %v245 = vunpack.c.l.b16 %v55
    %v246 = vunpack.c.l.b16 %v56
    %v247 = vunpack.c.l.b16 %v57
    %v248 = vunpack.c.l.b16 %v58
    %v249 = vunpack.c.l.b16 %v59
    %v250 = vunpack.c.l.b16 %v60
    %v251 = vunpack.c.l.b16 %v61
    %v252 = vunpack.c.l.b16 %v62
    %v253 = vunpack.c.l.b16 %v63
    %v254 = vpack.c.b16 %v239, %v238
    %v255 = vpack.c.b16 %v241, %v240
    %v256 = vpack.c.b16 %v243, %v242
    %v257 = vpack.c.b16 %v245, %v244
    %v258 = vpack.c.b16 %v247, %v246
    %v259 = vpack.c.b16 %v249, %v248
    %v260 = vpack.c.b16 %v251, %v250
    %v261 = vpack.c.b16 %v253, %v252
    %270 = vmatprep.subr.bf16.mxu0 0
    %271 = vmatpush1.bf16.msra.mxu0 %v254
    %272 = vmatprep.subr.bf16.mxu0 0
    %273 = vmatpush1.bf16.msra.mxu0 %v255
    %274 = vmatprep.subr.bf16.mxu0 0
    %275 = vmatpush1.bf16.msra.mxu0 %v256
    %276 = vmatprep.subr.bf16.mxu0 0
    %277 = vmatpush1.bf16.msra.mxu0 %v257
    %278 = vmatprep.subr.bf16.mxu0 0
    %279 = vmatpush1.bf16.msra.mxu0 %v258
    %280 = vmatprep.subr.bf16.mxu0 0
    %281 = vmatpush1.bf16.msra.mxu0 %v259
    %282 = vmatprep.subr.bf16.mxu0 0
    %283 = vmatpush1.bf16.msra.mxu0 %v260
    %284 = vmatprep.subr.bf16.mxu0 0
    %285 = vmatpush1.bf16.msra.mxu0 %v261
    %286 = vmatprep.subr.bf16.mxu0 0
    %287 = vmatpush1.bf16.msra.mxu0 0
    %288 = vmatprep.subr.bf16.mxu0 0
    %289 = vmatpush1.bf16.msra.mxu0 0
    %290 = vmatprep.subr.bf16.mxu0 0
    %291 = vmatpush1.bf16.msra.mxu0 0
    %292 = vmatprep.subr.bf16.mxu0 0
    %293 = vmatpush1.bf16.msra.mxu0 0
    %294 = vmatprep.subr.bf16.mxu0 0
    %295 = vmatpush1.bf16.msra.mxu0 0
    %296 = vmatprep.subr.bf16.mxu0 0
    %297 = vmatpush1.bf16.msra.mxu0 0
    %298 = vmatprep.subr.bf16.mxu0 0
    %299 = vmatpush1.bf16.msra.mxu0 0
    %300 = vmatprep.subr.bf16.mxu0 0
    %301 = vmatpush1.bf16.msra.mxu0 0
    %302 = vmatprep.mubr.bf16.mxu0 0
    %303 = vmatmul.mubr.bf16.gmra.mrb[0].mxu0 %v216
    %v304 = vpop.f32.mrb[0].mxu0
    %v305 = vadd.f32 %v221, %v304
    %v306 = vpop.f32.mrb[0].mxu0
    %v307 = vpop.f32.mrb[0].mxu0
    %v308 = vpop.f32.mrb[0].mxu0
    %309 = vdwg.mxu0
    %310 = vst [vmem:[%s2] sm:$0xff] %v305
    // Predicated region
    $region14: #{dqn_forward.1} parent=1 // pred_check
      _
    $region15: #{dqn_forward.1} parent=1 // pred_check_branch
      %312 = sbr.rel (0) target = $region17
    $region16: #{dqn_forward.1} parent=1 // pred_region
      _
    $region17: #{dqn_forward.1} parent=1 // pred_fallthru
      _
    // Predicated region
    $region18: #{dqn_forward.1} parent=1 // pred_check
      _
    $region19: #{dqn_forward.1} parent=1 // pred_check_branch
      %314 = sbr.rel (0) target = $region21
    $region20: #{dqn_forward.1} parent=1 // pred_region
      _
    $region21: #{dqn_forward.1} parent=1 // pred_fallthru
      _
    %315 = vsyncpa [#allocation3], 1

</llo_original>
